<compile_context>
chip_gen: v6e
topology: v6e:2x2x1
jax: 0.10.0
libtpu: 0.0.40
codegen_flags: <defaults>
</compile_context>

<pallas_src>
import functools
import math

import numpy as np
import jax
import jax.numpy as jnp
from jax.experimental import pallas as pl
from jax.experimental.pallas import tpu as pltpu

PRIOR_MEAN = math.log(0.05 / 0.95)   # torch.logit(0.05)
PRIOR_VAR = 10.0
INV_PRIOR_VAR = 1.0 / PRIOR_VAR
LOG_PRIOR_VAR = math.log(PRIOR_VAR)

_LANES = 128
_SUBLANES = 8
_TILE_ELEMS = _LANES * _SUBLANES          # 1024: one full f32 vreg tile
_MAX_BLOCK_ROWS = 512                     # rows of 128 lanes per grid step

# f32 copies of the constants (these are exactly what jnp uses after weak-type promotion).
_F32 = np.float32
_PM32 = _F32(PRIOR_MEAN)
_INV32 = _F32(INV_PRIOR_VAR)
_LPV32 = _F32(LOG_PRIOR_VAR)

# Per-element KL term of a zero-padded element (mu=0, q_var=0, eps=0), computed with the
# SAME f32 op order as the kernel so that (term - _PAD_TERM) is exactly 0 for padded lanes.
_dm0 = _F32(0.0) - _PM32
_PAD_TERM = float(
    ((_F32(1.0) * _INV32 + (_dm0 * _dm0) * _INV32) - _F32(1.0)) - (_F32(0.0) - _LPV32)
)


def _make_kernel(n_valid):
    """Kernel closed over the static valid-element count."""
    add_back = float(n_valid) * _PAD_TERM   # compile-time scalar

    def kernel(stk_ref, pi_ref, kl_ref, acc_ref):
        step = pl.program_id(0)
        last = pl.num_programs(0) - 1

        @pl.when(step == 0)
        def _():
            acc_ref[...] = jnp.zeros_like(acc_ref)

        mu = stk_ref[0]        # (TR, 128) f32 (zero-padded past n_valid)
        qvar = stk_ref[1]      # (TR, 128) f32
        eps = stk_ref[2]       # (TR, 128) f32

        # std = sqrt(exp(q_var)) = exp(0.5*q_var): one EUP exp instead of exp+sqrt.
        std = jnp.exp(0.5 * qvar)
        var = std * std                            # VALU, cheap

        # Reparameterized sample + sigmoid: unmasked lane/sublane-dense store.
        pi_ref[...] = jax.nn.sigmoid(mu + std * eps)

        # KL( N(mu, var) || N(prior_mean, prior_var) ), with
        # log(var/PRIOR_VAR) == q_var - log(PRIOR_VAR)  (no log op, no -inf risk).
        dm = mu - _PM32
        kl_terms = (var * _INV32 + dm * dm * _INV32 - 1.0 - (qvar - _LPV32))

        # Center by the padded-lane constant: padded lanes contribute exactly 0,
        # valid lanes get n*_PAD_TERM added back in the finalize step.
        centered = kl_terms - _PAD_TERM

        # Accumulate within-block as pure VALU adds into an (8,128) vreg accumulator;
        # the single cross-lane/sublane XLU reduce happens once, in the finalize branch.
        tr = centered.shape[0]
        acc_ref[...] += jnp.sum(
            centered.reshape(tr // _SUBLANES, _SUBLANES, _LANES), axis=0)

        @pl.when(step == last)
        def _():
            kl_ref[...] = jnp.reshape(
                0.5 * (jnp.sum(acc_ref[...]) + add_back), (1, 1))

    return kernel


@jax.jit
def contamination_forward(q_mu, q_var, eps):
    """Pallas forward. q_mu, q_var, eps: (num_groups,) f32.

    Returns (pi_weight: (num_groups,) f32, KL: scalar f32).
    """
    n = q_mu.shape[0]
    # Pad to a multiple of one full (8,128) vreg tile.
    n_pad = max(_TILE_ELEMS, ((n + _TILE_ELEMS - 1) // _TILE_ELEMS) * _TILE_ELEMS)
    rows = n_pad // _LANES
    if rows > _MAX_BLOCK_ROWS:
        # Row-tiled grid: round rows up so every block is exactly _MAX_BLOCK_ROWS.
        rows = ((rows + _MAX_BLOCK_ROWS - 1) // _MAX_BLOCK_ROWS) * _MAX_BLOCK_ROWS
        n_pad = rows * _LANES
        block_rows = _MAX_BLOCK_ROWS
    else:
        block_rows = rows
    num_blocks = rows // block_rows

    def prep(v):
        v = v.astype(jnp.float32).reshape(-1)
        if n_pad != n:
            v = jnp.pad(v, (0, n_pad - n))
        return v.reshape(rows, _LANES)

    # One stacked input -> one DMA descriptor per grid step instead of three.
    stk = jnp.stack([prep(q_mu), prep(q_var), prep(eps)], axis=0)  # (3, rows, 128)

    pi, kl = pl.pallas_call(
        _make_kernel(n),
        out_shape=(
            jax.ShapeDtypeStruct((rows, _LANES), jnp.float32),
            jax.ShapeDtypeStruct((1, 1), jnp.float32),
        ),
        grid_spec=pltpu.PrefetchScalarGridSpec(
            num_scalar_prefetch=0,
            grid=(num_blocks,),
            in_specs=[pl.BlockSpec((3, block_rows, _LANES), lambda i: (0, i, 0))],
            out_specs=(
                pl.BlockSpec((block_rows, _LANES), lambda i: (i, 0)),
                pl.BlockSpec((1, 1), lambda i: (0, 0)),   # resident scalar output
            ),
            scratch_shapes=[pltpu.VMEM((_SUBLANES, _LANES), jnp.float32)],
        ),
        compiler_params=pltpu.CompilerParams(
            dimension_semantics=("arbitrary",),   # resident KL accumulator
        ),
    )(stk)

    return pi.reshape(-1)[:n], kl[0, 0]


def _reference_forward(q_mu, q_var, eps):
    var = jnp.exp(q_var)
    x = q_mu + jnp.sqrt(var) * eps
    pi = jax.nn.sigmoid(x)
    ratio = var / PRIOR_VAR
    kl = 0.5 * jnp.sum(ratio + (q_mu - PRIOR_MEAN) ** 2 / PRIOR_VAR - 1.0 - jnp.log(ratio))
    return pi, kl


if __name__ == "__main__":
    num_groups = 8

    key = jax.random.PRNGKey(0)
    k_mu, k_var, k_eps = jax.random.split(key, 3)
    # Deterministic stand-ins for torch.normal(0, 1, size=(num_groups,)).
    q_mu = jax.random.normal(k_mu, (num_groups,), dtype=jnp.float32)
    q_var = jax.random.normal(k_var, (num_groups,), dtype=jnp.float32)
    # Deterministic stand-in for self.sample_eps() inside forward().
    eps = jax.random.normal(k_eps, (num_groups,), dtype=jnp.float32)

    pi_weight, kl = contamination_forward(q_mu, q_var, eps)
    jax.block_until_ready((pi_weight, kl))

    pi_ref, kl_ref = _reference_forward(q_mu, q_var, eps)
    assert pi_weight.shape == (num_groups,)
    assert jnp.allclose(pi_weight, pi_ref, atol=1e-5, rtol=1e-5), (pi_weight, pi_ref)
    assert jnp.allclose(kl, kl_ref, atol=1e-5, rtol=1e-5), (kl, kl_ref)

    print("KERNEL_OK")
</pallas_src>

<mosaic_0001>
module attributes {stable_mosaic.version = 11 : i64} {
  func.func @kernel(%arg0: i32, %arg1: memref<3x8x128xf32, #tpu.memory_space<vmem>>, %arg2: memref<8x128xf32, #tpu.memory_space<vmem>>, %arg3: memref<1x1xf32, #tpu.memory_space<vmem>>, %arg4: memref<8x128xf32, #tpu.memory_space<vmem>>) attributes {dimension_semantics = [#tpu.dimension_semantics<arbitrary>], iteration_bounds = array<i64: 1>, scalar_prefetch = 0 : i64, scratch_operands = 1 : i64, tpu.core_type = #tpu.core_type<tc>, window_params = [{transform_indices = @transform_0, window_bounds = array<i64: 3, 8, 128>}, {transform_indices = @transform_1, window_bounds = array<i64: 8, 128>}, {pipeline_mode = #tpu.pipeline_mode<synchronous>, transform_indices = @transform_2, window_bounds = array<i64: 1, 1>}]} {
    %c0_i32 = arith.constant 0 : i32
    %0 = arith.cmpi eq, %arg0, %c0_i32 : i32
    %1 = arith.extui %0 : i1 to i32
    %c0_i32_0 = arith.constant 0 : i32
    %2 = arith.cmpi ne, %1, %c0_i32_0 : i32
    scf.if %2 {
      %cst_23 = arith.constant 0.000000e+00 : f32
      %44 = vector.broadcast %cst_23 : f32 to vector<8x128xf32>
      %c0_24 = arith.constant 0 : index
      %c0_25 = arith.constant 0 : index
      %45 = vector.load %arg4[%c0_24, %c0_25] : memref<8x128xf32, #tpu.memory_space<vmem>>, vector<8x128xf32>
      tpu.vector_store %arg4[%c0_24, %c0_25], %44 {strides = array<i32>} : memref<8x128xf32, #tpu.memory_space<vmem>>, vector<8x128xf32>,
    } else {
    }
    %c0 = arith.constant 0 : index
    %c0_1 = arith.constant 0 : index
    %c0_2 = arith.constant 0 : index
    %3 = vector.load %arg1[%c0, %c0_1, %c0_2] : memref<3x8x128xf32, #tpu.memory_space<vmem>>, vector<1x8x128xf32>
    %4 = vector.shape_cast %3 : vector<1x8x128xf32> to vector<8x128xf32>
    %c1 = arith.constant 1 : index
    %c0_3 = arith.constant 0 : index
    %c0_4 = arith.constant 0 : index
    %5 = vector.load %arg1[%c1, %c0_3, %c0_4] : memref<3x8x128xf32, #tpu.memory_space<vmem>>, vector<1x8x128xf32>
    %6 = vector.shape_cast %5 : vector<1x8x128xf32> to vector<8x128xf32>
    %c2 = arith.constant 2 : index
    %c0_5 = arith.constant 0 : index
    %c0_6 = arith.constant 0 : index
    %7 = vector.load %arg1[%c2, %c0_5, %c0_6] : memref<3x8x128xf32, #tpu.memory_space<vmem>>, vector<1x8x128xf32>
    %8 = vector.shape_cast %7 : vector<1x8x128xf32> to vector<8x128xf32>
    %cst = arith.constant 5.000000e-01 : f32
    %9 = vector.broadcast %cst : f32 to vector<8x128xf32>
    %10 = arith.mulf %9, %6 : vector<8x128xf32>
    %11 = math.exp %10 : vector<8x128xf32>
    %12 = arith.mulf %11, %11 : vector<8x128xf32>
    %13 = arith.mulf %11, %8 : vector<8x128xf32>
    %14 = arith.addf %4, %13 : vector<8x128xf32>
    %15 = arith.negf %14 : vector<8x128xf32>
    %16 = math.exp %15 : vector<8x128xf32>
    %cst_7 = arith.constant 1.000000e+00 : f32
    %17 = vector.broadcast %cst_7 : f32 to vector<8x128xf32>
    %18 = arith.addf %17, %16 : vector<8x128xf32>
    %19 = arith.divf %17, %18 : vector<8x128xf32>
    %c0_8 = arith.constant 0 : index
    %c0_9 = arith.constant 0 : index
    %20 = vector.load %arg2[%c0_8, %c0_9] : memref<8x128xf32, #tpu.memory_space<vmem>>, vector<8x128xf32>
    tpu.vector_store %arg2[%c0_8, %c0_9], %19 {strides = array<i32>} : memref<8x128xf32, #tpu.memory_space<vmem>>, vector<8x128xf32>,
    %cst_10 = arith.constant -2.94443893 : f32
    %21 = vector.broadcast %cst_10 : f32 to vector<8x128xf32>
    %22 = arith.subf %4, %21 : vector<8x128xf32>
    %cst_11 = arith.constant 1.000000e-01 : f32
    %23 = vector.broadcast %cst_11 : f32 to vector<8x128xf32>
    %24 = arith.mulf %12, %23 : vector<8x128xf32>
    %25 = arith.mulf %22, %22 : vector<8x128xf32>
    %cst_12 = arith.constant 1.000000e-01 : f32
    %26 = vector.broadcast %cst_12 : f32 to vector<8x128xf32>
    %27 = arith.mulf %25, %26 : vector<8x128xf32>
    %28 = arith.addf %24, %27 : vector<8x128xf32>
    %cst_13 = arith.constant 1.000000e+00 : f32
    %29 = vector.broadcast %cst_13 : f32 to vector<8x128xf32>
    %30 = arith.subf %28, %29 : vector<8x128xf32>
    %cst_14 = arith.constant 2.30258512 : f32
    %31 = vector.broadcast %cst_14 : f32 to vector<8x128xf32>
    %32 = arith.subf %6, %31 : vector<8x128xf32>
    %33 = arith.subf %30, %32 : vector<8x128xf32>
    %cst_15 = arith.constant 2.26955724 : f32
    %34 = vector.broadcast %cst_15 : f32 to vector<8x128xf32>
    %35 = arith.subf %33, %34 : vector<8x128xf32>
    %c0_16 = arith.constant 0 : index
    %c0_17 = arith.constant 0 : index
    %36 = vector.load %arg4[%c0_16, %c0_17] : memref<8x128xf32, #tpu.memory_space<vmem>>, vector<8x128xf32>
    %37 = vector.shape_cast %35 : vector<8x128xf32> to vector<1x8x128xf32>
    %cst_18 = arith.constant dense<0.000000e+00> : vector<8x128xf32>
    %38 = vector.multi_reduction <add>, %37, %cst_18 [0] : vector<1x8x128xf32> to vector<8x128xf32>
    %39 = arith.addf %36, %38 : vector<8x128xf32>
    %c0_19 = arith.constant 0 : index
    %c0_20 = arith.constant 0 : index
    %40 = vector.load %arg4[%c0_19, %c0_20] : memref<8x128xf32, #tpu.memory_space<vmem>>, vector<8x128xf32>
    tpu.vector_store %arg4[%c0_19, %c0_20], %39 {strides = array<i32>} : memref<8x128xf32, #tpu.memory_space<vmem>>, vector<8x128xf32>,
    %c0_i32_21 = arith.constant 0 : i32
    %41 = arith.cmpi eq, %arg0, %c0_i32_21 : i32
    %42 = arith.extui %41 : i1 to i32
    %c0_i32_22 = arith.constant 0 : i32
    %43 = arith.cmpi ne, %42, %c0_i32_22 : i32
    scf.if %43 {
      %c0_23 = arith.constant 0 : index
      %c0_24 = arith.constant 0 : index
      %44 = vector.load %arg4[%c0_23, %c0_24] : memref<8x128xf32, #tpu.memory_space<vmem>>, vector<8x128xf32>
      %45 = vector.shape_cast %44 : vector<8x128xf32> to vector<1x8x128xf32>
      %cst_25 = arith.constant dense<0.000000e+00> : vector<1xf32>
      %46 = vector.multi_reduction <add>, %45, %cst_25 [1, 2] : vector<1x8x128xf32> to vector<1xf32>
      %47 = vector.shape_cast %46 : vector<1xf32> to vector<1x1x1xf32>
      %48 = vector.extract %47[0, 0, 0] : f32 from vector<1x1x1xf32>
      %cst_26 = arith.constant 18.1564579 : f32
      %49 = arith.addf %48, %cst_26 : f32
      %cst_27 = arith.constant 5.000000e-01 : f32
      %50 = arith.mulf %cst_27, %49 : f32
      %51 = vector.broadcast %50 : f32 to vector<1x1xf32>
      %c0_28 = arith.constant 0 : index
      %c0_29 = arith.constant 0 : index
      %52 = vector.load %arg3[%c0_28, %c0_29] : memref<1x1xf32, #tpu.memory_space<vmem>>, vector<1x1xf32>
      tpu.vector_store %arg3[%c0_28, %c0_29], %51 {strides = array<i32>} : memref<1x1xf32, #tpu.memory_space<vmem>>, vector<1x1xf32>,
    } else {
    }
    return
  }
  func.func @transform_0(%arg0: i32) -> (i32, i32, i32) {
    %c0_i32 = arith.constant 0 : i32
    %c0_i32_0 = arith.constant 0 : i32
    %c0_i32_1 = arith.constant 0 : i32
    return %c0_i32, %arg0, %c0_i32_0 : i32, i32, i32
  }
  func.func @transform_1(%arg0: i32) -> (i32, i32) {
    %c0_i32 = arith.constant 0 : i32
    %c0_i32_0 = arith.constant 0 : i32
    return %arg0, %c0_i32 : i32, i32
  }
  func.func @transform_2(%arg0: i32) -> (i32, i32) {
    %c0_i32 = arith.constant 0 : i32
    %c0_i32_0 = arith.constant 0 : i32
    %c0_i32_1 = arith.constant 0 : i32
    return %c0_i32, %c0_i32_0 : i32, i32
  }
}

</mosaic_0001>

<llo_original>
// kernel: contamination_forward.1
$region0: #{contamination_forward.1}
  #allocation0 [shape = 'u32[]', space=smem, size = 0x4, offset = 0x4, fixed_abs, tag = 'smem constant byte address 0x4 - core index']
  #allocation1 [shape = 'u32[144,128]{1,0:T(1,128)}', space=vmem, size = 0x12000, scoped, tag = 'internal scratch']
  #allocation2 [shape = 'f32[8,128]{1,0:T(8,128)}', space=vmem, size = 0x1000, scoped, tag = 'scratch operand']
  %s0 = inlined_call_operand.vmem [shape: f32[3,8,128], index: 0, kind: input, shape index: {}]
  %s1 = inlined_call_operand.vmem [shape: f32[8,128], index: 1, kind: output, shape index: {0}]
  %s2 = inlined_call_operand.hbm [shape: f32[1,1], index: 2, kind: output, shape index: {1}]
  %3 = xla_tuple %s1, %s2
  %s4 = sld [smem:[#allocation0]]
  $region30: #{contamination_forward.1} parent=0
    _
  %s6 = ssub.s32 1, %s4
  %s7 = scalar_select 0, %s6, %s4
  $region1: #{contamination_forward.1} parent=0
    #allocation3 [shape = 'u8[512]{0}', space=vmem, size = 0x400, scoped, tag = 'output window, operand 1, single buffered']
    #allocation4 [shape = 's32[1]{0}', space=sflag, size = 0x4, scoped, tag = 'scoped memory for contamination_forward.1']
    %8 = vsyncpa [#allocation4], 0
    // Predicated region
    $region2: #{contamination_forward.1} parent=1 // pred_check
      _
    $region3: #{contamination_forward.1} parent=1 // pred_check_branch
      %10 = sbr.rel (0) target = $region5
    $region4: #{contamination_forward.1} parent=1 // pred_region
      _
    $region5: #{contamination_forward.1} parent=1 // pred_fallthru
      _
    %p11 = scmp.eq.s32.totalorder 0, 0
    // Predicated region
    $region6: #{contamination_forward.1} parent=1 // pred_check
      %p12 = pneg %p11
    $region7: #{contamination_forward.1} parent=1 // pred_check_branch
      %14 = sbr.rel (%p12) target = $region9
    $region8: #{contamination_forward.1} parent=1 // pred_region
      %15 = vst [vmem:[#allocation2] sm:$0xff] 0.0
    $region9: #{contamination_forward.1} parent=1 // pred_fallthru
      _
    %v16 = vld [vmem:[%s0] sm:$0xff]
    %s17 = scalar_lea.vmem %s0, 8
    %v18 = vld [vmem:[%s17] sm:$0xff]
    %s19 = scalar_lea.vmem %s0, 16
    %v20 = vld [vmem:[%s19] sm:$0xff]
    %v21 = vmul.f32 %v18, 0.5
    %v22 = vmul.f32 %v21, 1.442695
    %v23 = vpow.pop %v22
    %v24 = vmul.f32 %v23, %v23
    %v25 = vmul.f32 %v23, %v20
    %v26 = vadd.f32 %v16, %v25
    %v27 = vxor.u32 %v26, 2147483648
    %v28 = vmul.f32 %v27, 1.442695
    %v29 = vpow.pop %v28
    %v30 = vadd.f32 %v29, 1.0
    %v31 = vrcp.pop %v30
    %v32 = vmul.f32 1.0, %v31
    %33 = vst [vmem:[%s1] sm:$0xff] %v32
    %v34 = vsub.f32 %v16, -2.944439
    %v35 = vmul.f32 %v24, 0.1
    %v36 = vmul.f32 %v34, %v34
    %v37 = vmul.f32 %v36, 0.1
    %v38 = vadd.f32 %v35, %v37
    %v39 = vsub.f32 %v38, 1.0
    %v40 = vsub.f32 %v18, 2.3025851
    %v41 = vsub.f32 %v39, %v40
    %v42 = vsub.f32 %v41, 2.2695572
    %v43 = vld [vmem:[#allocation2] sm:$0xff]
    %v44 = vadd.f32 %v42, 0.0
    %v45 = vadd.f32 %v43, %v44
    %46 = vst [vmem:[#allocation2] sm:$0xff] %v45
    // Predicated region
    $region10: #{contamination_forward.1} parent=1 // pred_check
      %p47 = pneg %p11
    $region11: #{contamination_forward.1} parent=1 // pred_check_branch
      %49 = sbr.rel (%p47) target = $region13
    $region12: #{contamination_forward.1} parent=1 // pred_region
      %v50 = vld [vmem:[#allocation2] sm:$0xff]
      %51 = vadd.xlane.f32.xlu0 %v50
      %v52 = vpop.xlane.xlu0 %51
      %v53 = vrot.slane %v52, 4
      %v54 = vadd.f32 %v52, %v53
      %v55 = vrot.slane %v54, 2
      %v56 = vadd.f32 %v54, %v55
      %v57 = vrot.slane %v56, 1
      %v58 = vadd.f32 %v56, %v57
      %s59 = vtos %v58
      %s60 = sadd.f32 %s59, 18.156458
      %s61 = smul.f32 %s60, 0.5
      %v62 = vstv %s61
      %vm63 = vcmask 0
      %64 = vst.msk [vmem:[#allocation3] sm:$0x1] %vm63, %v62
    $region13: #{contamination_forward.1} parent=1 // pred_fallthru
      _
    // Predicated region
    $region14: #{contamination_forward.1} parent=1 // pred_check
      _
    $region15: #{contamination_forward.1} parent=1 // pred_check_branch
      %66 = sbr.rel (0) target = $region17
    $region16: #{contamination_forward.1} parent=1 // pred_region
      _
    $region17: #{contamination_forward.1} parent=1 // pred_fallthru
      _
    // Predicated region
    $region18: #{contamination_forward.1} parent=1 // pred_check
      _
    $region19: #{contamination_forward.1} parent=1 // pred_check_branch
      %68 = sbr.rel (0) target = $region21
    $region20: #{contamination_forward.1} parent=1 // pred_region
      %s70 = ssub.s32 16, 16
      %71 = vsyncadd [#allocation4], %s70
      %s73 = sshll.u32 [#allocation3], 4
      %s74 = int_to_ptr.vmem [resolvable:$true] %s73
      %76 = dma.vmem_to_hbm [thread:$0]  %s74, 16, %s2, [#allocation4]
    $region21: #{contamination_forward.1} parent=1 // pred_fallthru
      _
    // Predicated region
    $region22: #{contamination_forward.1} parent=1 // pred_check
      _
    $region23: #{contamination_forward.1} parent=1 // pred_check_branch
      %78 = sbr.rel (0) target = $region25
    $region24: #{contamination_forward.1} parent=1 // pred_region
      _
    $region25: #{contamination_forward.1} parent=1 // pred_fallthru
      _
    // Predicated region
    $region26: #{contamination_forward.1} parent=1 // pred_check
      _
    $region27: #{contamination_forward.1} parent=1 // pred_check_branch
      %80 = sbr.rel (0) target = $region29
    $region28: #{contamination_forward.1} parent=1 // pred_region
      %81 = dma.done [#allocation4], 16
    $region29: #{contamination_forward.1} parent=1 // pred_fallthru
      _
    %82 = vsyncpa [#allocation4], 1

</llo_original>
